<compile_context>
chip_gen: v5e
topology: v5e:2x2
jax: 0.10.0
libtpu: 0.0.40
codegen_flags: <defaults>
</compile_context>

<pallas_src>
import jax
import jax.numpy as jnp
from jax.experimental import pallas as pl
from jax.experimental.pallas import tpu as pltpu


_NUM_SLICES = 2                  # leading "parallel" grid axis (2 TCs on v7x)
_MAX_ONEHOT_BYTES = 256 * 1024   # ~64 vregs of f32 one-hot before chunking


def _w_j1_kernel(feat_ref, lab_ref, sums_ref, counts_ref):
    """Accumulate per-class feature sums & counts for one (slice, tile)."""
    inner = pl.program_id(1)

    # ---- init this slice's accumulators on its first tile ------------------
    @pl.when(inner == 0)
    def _():
        sums_ref[...] = jnp.zeros_like(sums_ref)
        counts_ref[...] = jnp.zeros_like(counts_ref)

    c = sums_ref.shape[0]
    tn = feat_ref.shape[0]

    def accumulate(start, size):
        feats = feat_ref[pl.ds(start, size), :].astype(jnp.float32)  # (size, D)
        lbl = lab_ref[:, pl.ds(start, size)]                         # (1, size)
        # one-hot transposed, built in-register (padded rows carry label == C
        # so their column is all-zero and never touches the accumulators)
        cls = jax.lax.broadcasted_iota(jnp.int32, (c, size), 0)
        oh_t = (cls == lbl).astype(jnp.float32)                      # (C, size)
        sums_ref[...] += jnp.dot(oh_t, feats,
                                 preferred_element_type=jnp.float32)
        counts_ref[...] += jnp.sum(oh_t, axis=1, keepdims=True)

    # ---- streaming accumulation (chunk the one-hot if it would spill) ------
    if c * tn * 4 <= _MAX_ONEHOT_BYTES:
        accumulate(0, tn)
    else:
        if tn % 512 == 0:
            chunk = 512
        elif tn % 256 == 0:
            chunk = 256
        else:
            chunk = 128          # block_n is always a multiple of 128
        num_chunks = tn // chunk

        def body(ci, carry):
            start = pl.multiple_of(ci * chunk, chunk)
            accumulate(start, chunk)
            return carry

        jax.lax.fori_loop(0, num_chunks, body, 0)


def w_j1_loss(features, labels, conf_mat, num_classes, *, block_n=None):
    """features: (N, D) f32/bf16, labels: (N,) int, conf_mat: (C, C).

    conf_mat is accepted for API parity with the PyTorch forward but does not
    influence the returned loss (i=4, j=9 are hardcoded in the reference).
    """
    del conf_mat  # dead w.r.t. the returned loss
    assert num_classes > 9, "w_j1_Loss hardcodes i=4, j=9; need num_classes > 9"

    # Stream bf16 directly (halves HBM bytes); anything else goes to f32.
    if features.dtype != jnp.float32 and features.dtype != jnp.bfloat16:
        features = features.astype(jnp.float32)
    labels = labels.astype(jnp.int32)
    n, d = features.shape
    itemsize = jnp.dtype(features.dtype).itemsize

    # ---- bytes-targeted tile sizing (~1 MiB features tile) -----------------
    if block_n is None:
        target = (1 << 20) // (itemsize * d)
        target = max(512, min(target, 8192))
    else:
        target = max(128, int(block_n))
    target = max(128, (target // 128) * 128)          # (8,128)-rule alignment

    per_slice = -(-n // _NUM_SLICES)                  # rows per parallel slice
    per_slice = -(-per_slice // 128) * 128
    block_n = min(target, per_slice)
    inner_blocks = -(-per_slice // block_n)
    per_slice_pad = inner_blocks * block_n
    n_pad = _NUM_SLICES * per_slice_pad

    # pad N; padded rows get label == C so they never touch the accumulators
    if n_pad != n:
        features = jnp.pad(features, ((0, n_pad - n), (0, 0)))
        labels = jnp.pad(labels, (0, n_pad - n), constant_values=num_classes)
    labels2d = labels.reshape(1, n_pad)

    c = num_classes
    grid = (_NUM_SLICES, inner_blocks)

    sums, counts = pl.pallas_call(
        _w_j1_kernel,
        out_shape=(
            jax.ShapeDtypeStruct((_NUM_SLICES, c, d), jnp.float32),
            jax.ShapeDtypeStruct((_NUM_SLICES, c, 1), jnp.float32),
        ),
        grid_spec=pltpu.PrefetchScalarGridSpec(
            num_scalar_prefetch=0,
            grid=grid,
            in_specs=[
                pl.BlockSpec((block_n, d),
                             lambda p, i: (p * inner_blocks + i, 0)),
                pl.BlockSpec((1, block_n),
                             lambda p, i: (0, p * inner_blocks + i)),
            ],
            out_specs=(
                pl.BlockSpec((None, c, d), lambda p, i: (p, 0, 0)),
                pl.BlockSpec((None, c, 1), lambda p, i: (p, 0, 0)),
            ),
        ),
        compiler_params=pltpu.CompilerParams(
            dimension_semantics=("parallel", "arbitrary"),
            vmem_limit_bytes=32 * 1024 * 1024,   # fits v5e scoped / v7x 64 MiB
        ),
    )(features, labels2d)

    # ---- tiny epilogue in plain JAX (single 4-9 centroid pair) -------------
    total_sums = jnp.sum(sums, axis=0)                       # (C, D)
    total_counts = jnp.maximum(jnp.sum(counts, axis=0), 1.0)  # (C, 1) guarded
    means = total_sums / total_counts                        # (C, D) centroids
    diff = means[4] - means[9]
    min_dist = jnp.sqrt(jnp.sum(diff * diff))
    return jnp.log(1.0 / min_dist + 1.0)


def _w_j1_loss_ref(features, labels, num_classes):
    """Pure-JAX reference with identical math (sanity check)."""
    features = features.astype(jnp.float32)
    oh = jax.nn.one_hot(labels, num_classes, dtype=jnp.float32)    # (N, C)
    counts = jnp.maximum(oh.sum(0), 1.0)[:, None]                  # (C, 1)
    means = (oh.T @ features) / counts                             # (C, D)
    d2 = ((means[:, None, :] - means[None, :, :]) ** 2).sum(-1)
    dist = jnp.sqrt(jnp.maximum(d2, 0.0))
    min_dist = dist[4, 9]
    return jnp.log(1.0 / min_dist + 1.0)


if __name__ == "__main__":
    N, D, C = 256, 32, 16
    key = jax.random.PRNGKey(0)
    kf, kl = jax.random.split(key)
    features = jax.random.normal(kf, (N, D), dtype=jnp.float32)
    # deterministic labels covering every class (so classes 4 and 9 are populated)
    labels = jax.random.permutation(kl, jnp.arange(N) % C).astype(jnp.int32)
    conf_mat = jnp.zeros((C, C), dtype=jnp.float32)   # unused by the loss value

    loss = w_j1_loss(features, labels, conf_mat, C)
    jax.block_until_ready(loss)

    ref = _w_j1_loss_ref(features, labels, C)
    assert jnp.allclose(loss, ref, rtol=1e-4, atol=1e-5), (loss, ref)

    print("KERNEL_OK")
</pallas_src>

<mosaic_0001>
module attributes {stable_mosaic.version = 11 : i64} {
  func.func @_w_j1_kernel(%arg0: i32, %arg1: i32, %arg2: memref<128x32xf32, #tpu.memory_space<vmem>>, %arg3: memref<1x128xi32, #tpu.memory_space<vmem>>, %arg4: memref<1x16x32xf32, #tpu.memory_space<vmem>>, %arg5: memref<1x16x1xf32, #tpu.memory_space<vmem>>) attributes {dimension_semantics = [#tpu.dimension_semantics<parallel>, #tpu.dimension_semantics<arbitrary>], iteration_bounds = array<i64: 2, 1>, scalar_prefetch = 0 : i64, scratch_operands = 0 : i64, tpu.core_type = #tpu.core_type<tc>, window_params = [{transform_indices = @transform_0, window_bounds = array<i64: 128, 32>}, {transform_indices = @transform_1, window_bounds = array<i64: 1, 128>}, {transform_indices = @transform_2, window_bounds = array<i64: 1, 16, 32>}, {transform_indices = @transform_3, window_bounds = array<i64: 1, 16, 1>}]} {
    %c0_i32 = arith.constant 0 : i32
    %0 = arith.cmpi eq, %arg1, %c0_i32 : i32
    %1 = arith.extui %0 : i1 to i32
    %c0_i32_0 = arith.constant 0 : i32
    %2 = arith.cmpi ne, %1, %c0_i32_0 : i32
    scf.if %2 {
      %cst_17 = arith.constant 0.000000e+00 : f32
      %25 = vector.broadcast %cst_17 : f32 to vector<16x32xf32>
      %c0_18 = arith.constant 0 : index
      %c0_19 = arith.constant 0 : index
      %c0_20 = arith.constant 0 : index
      %26 = vector.load %arg4[%c0_18, %c0_19, %c0_20] : memref<1x16x32xf32, #tpu.memory_space<vmem>>, vector<1x16x32xf32>
      %27 = vector.shape_cast %26 : vector<1x16x32xf32> to vector<16x32xf32>
      %28 = vector.shape_cast %25 : vector<16x32xf32> to vector<1x16x32xf32>
      tpu.vector_store %arg4[%c0_18, %c0_19, %c0_20], %28 {strides = array<i32>} : memref<1x16x32xf32, #tpu.memory_space<vmem>>, vector<1x16x32xf32>,
      %cst_21 = arith.constant 0.000000e+00 : f32
      %29 = vector.broadcast %cst_21 : f32 to vector<16x1xf32>
      %c0_22 = arith.constant 0 : index
      %c0_23 = arith.constant 0 : index
      %c0_24 = arith.constant 0 : index
      %30 = vector.load %arg5[%c0_22, %c0_23, %c0_24] : memref<1x16x1xf32, #tpu.memory_space<vmem>>, vector<1x16x1xf32>
      %31 = vector.shape_cast %30 : vector<1x16x1xf32> to vector<16x1xf32>
      %32 = vector.shape_cast %29 : vector<16x1xf32> to vector<1x16x1xf32>
      tpu.vector_store %arg5[%c0_22, %c0_23, %c0_24], %32 {strides = array<i32>} : memref<1x16x1xf32, #tpu.memory_space<vmem>>, vector<1x16x1xf32>,
    } else {
    }
    %c0 = arith.constant 0 : index
    %c0_1 = arith.constant 0 : index
    %3 = vector.load %arg2[%c0, %c0_1] : memref<128x32xf32, #tpu.memory_space<vmem>>, vector<128x32xf32>
    %c0_2 = arith.constant 0 : index
    %c0_3 = arith.constant 0 : index
    %4 = vector.load %arg3[%c0_2, %c0_3] : memref<1x128xi32, #tpu.memory_space<vmem>>, vector<1x128xi32>
    %5 = tpu.iota {dimensions = array<i32: 0>} : vector<16x128xi32>
    %6 = vector.broadcast %4 : vector<1x128xi32> to vector<16x128xi32>
    %7 = arith.cmpi eq, %5, %6 : vector<16x128xi32>
    %8 = arith.extui %7 : vector<16x128xi1> to vector<16x128xi32>
    %9 = arith.sitofp %8 : vector<16x128xi32> to vector<16x128xf32>
    %c0_4 = arith.constant 0 : index
    %c0_5 = arith.constant 0 : index
    %c0_6 = arith.constant 0 : index
    %10 = vector.load %arg4[%c0_4, %c0_5, %c0_6] : memref<1x16x32xf32, #tpu.memory_space<vmem>>, vector<1x16x32xf32>
    %11 = vector.shape_cast %10 : vector<1x16x32xf32> to vector<16x32xf32>
    %cst = arith.constant dense<0.000000e+00> : vector<16x32xf32>
    %12 = tpu.matmul %9, %3, %cst {dimension_numbers = #tpu.dot_dimension_numbers<[1], [0], [0], [1], [0, 0, 1, 1], [], []>} : vector<16x128xf32>, vector<128x32xf32>, vector<16x32xf32> -> vector<16x32xf32>
    %13 = arith.addf %11, %12 : vector<16x32xf32>
    %c0_7 = arith.constant 0 : index
    %c0_8 = arith.constant 0 : index
    %c0_9 = arith.constant 0 : index
    %14 = vector.load %arg4[%c0_7, %c0_8, %c0_9] : memref<1x16x32xf32, #tpu.memory_space<vmem>>, vector<1x16x32xf32>
    %15 = vector.shape_cast %14 : vector<1x16x32xf32> to vector<16x32xf32>
    %16 = vector.shape_cast %13 : vector<16x32xf32> to vector<1x16x32xf32>
    tpu.vector_store %arg4[%c0_7, %c0_8, %c0_9], %16 {strides = array<i32>} : memref<1x16x32xf32, #tpu.memory_space<vmem>>, vector<1x16x32xf32>,
    %c0_10 = arith.constant 0 : index
    %c0_11 = arith.constant 0 : index
    %c0_12 = arith.constant 0 : index
    %17 = vector.load %arg5[%c0_10, %c0_11, %c0_12] : memref<1x16x1xf32, #tpu.memory_space<vmem>>, vector<1x16x1xf32>
    %18 = vector.shape_cast %17 : vector<1x16x1xf32> to vector<16x1xf32>
    %cst_13 = arith.constant dense<0.000000e+00> : vector<16xf32>
    %19 = vector.multi_reduction <add>, %9, %cst_13 [1] : vector<16x128xf32> to vector<16xf32>
    %20 = vector.shape_cast %19 : vector<16xf32> to vector<16x1xf32>
    %21 = arith.addf %18, %20 : vector<16x1xf32>
    %c0_14 = arith.constant 0 : index
    %c0_15 = arith.constant 0 : index
    %c0_16 = arith.constant 0 : index
    %22 = vector.load %arg5[%c0_14, %c0_15, %c0_16] : memref<1x16x1xf32, #tpu.memory_space<vmem>>, vector<1x16x1xf32>
    %23 = vector.shape_cast %22 : vector<1x16x1xf32> to vector<16x1xf32>
    %24 = vector.shape_cast %21 : vector<16x1xf32> to vector<1x16x1xf32>
    tpu.vector_store %arg5[%c0_14, %c0_15, %c0_16], %24 {strides = array<i32>} : memref<1x16x1xf32, #tpu.memory_space<vmem>>, vector<1x16x1xf32>,
    return
  }
  func.func @transform_0(%arg0: i32, %arg1: i32) -> (i32, i32) {
    %c1_i32 = arith.constant 1 : i32
    %0 = arith.muli %arg0, %c1_i32 : i32
    %1 = arith.addi %0, %arg1 : i32
    %c0_i32 = arith.constant 0 : i32
    %c0_i32_0 = arith.constant 0 : i32
    return %1, %c0_i32 : i32, i32
  }
  func.func @transform_1(%arg0: i32, %arg1: i32) -> (i32, i32) {
    %c1_i32 = arith.constant 1 : i32
    %0 = arith.muli %arg0, %c1_i32 : i32
    %1 = arith.addi %0, %arg1 : i32
    %c0_i32 = arith.constant 0 : i32
    %c0_i32_0 = arith.constant 0 : i32
    return %c0_i32, %1 : i32, i32
  }
  func.func @transform_2(%arg0: i32, %arg1: i32) -> (i32, i32, i32) {
    %c0_i32 = arith.constant 0 : i32
    %c0_i32_0 = arith.constant 0 : i32
    %c0_i32_1 = arith.constant 0 : i32
    return %arg0, %c0_i32, %c0_i32_0 : i32, i32, i32
  }
  func.func @transform_3(%arg0: i32, %arg1: i32) -> (i32, i32, i32) {
    %c0_i32 = arith.constant 0 : i32
    %c0_i32_0 = arith.constant 0 : i32
    %c0_i32_1 = arith.constant 0 : i32
    return %arg0, %c0_i32, %c0_i32_0 : i32, i32, i32
  }
}

</mosaic_0001>

<llo_original>
// kernel: tpu_custom_call.1
$region0: #{tpu_custom_call.1}
  #allocation0 [shape = 'u32[]', space=smem, size = 0x4, offset = 0x4, fixed_abs, tag = 'smem constant byte address 0x4 - core index']
  #allocation1 [shape = 'u32[72,128]{1,0:T(1,128)}', space=vmem, size = 0x9000, scoped, tag = 'internal scratch']
  %s0 = inlined_call_operand.vmem [shape: f32[256,32], index: 0, kind: input, shape index: {}]
  %s1 = inlined_call_operand.vmem [shape: s32[1,256], index: 1, kind: input, shape index: {}]
  %s2 = inlined_call_operand.hbm [shape: f32[2,16,32], index: 2, kind: output, shape index: {0}]
  %s3 = inlined_call_operand.vmem [shape: f32[2,16,1], index: 3, kind: output, shape index: {1}]
  %4 = xla_tuple %s2, %s3
  %s5 = sld [smem:[#allocation0]]
  $region53: #{tpu_custom_call.1} parent=0
    _
  %s7 = ssub.s32 1, %s5
  %s8 = scalar_select 0, %s7, %s5
  $region1: #{tpu_custom_call.1} parent=0
    #allocation2 [shape = 'u8[16384]{0}', space=vmem, size = 0x4000, scoped, tag = 'output window, operand 0']
    #allocation3 [shape = 's32[2]{0}', space=sflag, size = 0x8, scoped, tag = 'scoped memory for tpu_custom_call.1']
    %9 = vsyncpa [#allocation3], 0
    %s10 = scalar_lea.sflag [#allocation3], 1
    %11 = vsyncpa %s10, 0
    loop: start=0, step=1, limit=4
    $region2: #{tpu_custom_call.1} parent=1 // loop_pre_header
      _
    $region3: #{tpu_custom_call.1} parent=1 // loop_header
      %s13 = sphi 0, %s17
      %p14 = scmp.ge.s32.totalorder %s13, 4
      %s20 = sphi 0, %s32
      %s21 = sphi 0, %s28
      %s22 = sphi 0, %s20
      %s23 = sphi 0, %s21
      %s24 = sphi 0, %s22
      %s25 = sphi 0, %s23
      %s37 = sphi 0, %s39
      %s40 = sphi 0, %s37
      %s41 = sphi 0, %s40
      %s57 = sphi 0, %s41
      %s65 = sphi 0, %s67
      %s68 = sphi 0, %s65
      %s69 = sphi 0, %s68
      %s85 = sphi 0, %s69
      %s91 = sphi 0, %s93
      %s94 = sphi 0, %s91
      %s95 = sphi 0, %s94
      %s111 = sphi 0, %s95
      %s117 = sphi 0, %s119
      %s120 = sphi 0, %s117
      %s121 = sphi 0, %s120
      %s137 = sphi 0, %s121
    $region4: #{tpu_custom_call.1} parent=1 // loop_header_branch
      %16 = sbr.rel (%p14) target = $region8
    $region5: #{tpu_custom_call.1} parent=1 // loop_body
      %s18 = ssub.s32 %s13, 1
      %s19 = ssub.s32 %s13, 2
      %s26 = sadd.s32 1, %s21
      %p27 = scmp.ge.s32.totalorder %s26, 1
      %s28 = scalar_select %p27, 0, %s26
      %s29 = sadd.s32 1, %s20
      %s30 = scalar_select %p27, %s29, %s20
      %p31 = scmp.ge.s32.totalorder %s30, 2
      %s32 = scalar_select %p31, 0, %s30
      %s33 = sadd.s32 %s20, %s21
      %s34 = sadd.s32 %s32, %s28
      %s35 = ssub.s32 %s33, %s34
      %p36 = scmp.eq.s32.totalorder %s35, 0
      %s38 = sadd.s32 %s37, 1
      %s39 = scalar_select %p36, %s37, %s38
      %p42 = pneg %p36
      %p43 = scmp.eq.s32.totalorder %s13, 1
      %p44 = por %p42, %p43
      %p45 = scmp.ne.s32.totalorder %s37, %s40
      %p46 = scmp.eq.s32.totalorder %s13, 0
      %p47 = por %p45, %p46
      %p48 = scmp.ne.s32.totalorder %s37, %s40
      %p49 = scmp.eq.s32.totalorder %s18, 1
      %p50 = por %p48, %p49
      %p51 = scmp.ne.s32.totalorder %s40, %s41
      %p52 = scmp.eq.s32.totalorder %s18, 0
      %p53 = por %p51, %p52
      %p54 = scmp.ne.s32.totalorder %s40, %s41
      %p55 = scmp.eq.s32.totalorder %s19, 1
      %p56 = por %p54, %p55
      %p58 = scmp.ne.s32.totalorder %s41, %s57
      %p59 = scmp.eq.s32.totalorder %s19, 0
      %p60 = por %p58, %p59
      %s61 = sadd.s32 %s20, %s21
      %s62 = sadd.s32 %s32, %s28
      %s63 = ssub.s32 %s61, %s62
      %p64 = scmp.eq.s32.totalorder %s63, 0
      %s66 = sadd.s32 %s65, 1
      %s67 = scalar_select %p64, %s65, %s66
      %p70 = pneg %p64
      %p71 = scmp.eq.s32.totalorder %s13, 1
      %p72 = por %p70, %p71
      %p73 = scmp.ne.s32.totalorder %s65, %s68
      %p74 = scmp.eq.s32.totalorder %s13, 0
      %p75 = por %p73, %p74
      %p76 = scmp.ne.s32.totalorder %s65, %s68
      %p77 = scmp.eq.s32.totalorder %s18, 1
      %p78 = por %p76, %p77
      %p79 = scmp.ne.s32.totalorder %s68, %s69
      %p80 = scmp.eq.s32.totalorder %s18, 0
      %p81 = por %p79, %p80
      %p82 = scmp.ne.s32.totalorder %s68, %s69
      %p83 = scmp.eq.s32.totalorder %s19, 1
      %p84 = por %p82, %p83
      %p86 = scmp.ne.s32.totalorder %s69, %s85
      %p87 = scmp.eq.s32.totalorder %s19, 0
      %p88 = por %p86, %p87
      %s89 = ssub.s32 %s20, %s32
      %p90 = scmp.eq.s32.totalorder %s89, 0
      %s92 = sadd.s32 %s91, 1
      %s93 = scalar_select %p90, %s91, %s92
      %p96 = pneg %p90
      %p97 = scmp.eq.s32.totalorder %s13, 1
      %p98 = por %p96, %p97
      %p99 = scmp.ne.s32.totalorder %s91, %s94
      %p100 = scmp.eq.s32.totalorder %s13, 0
      %p101 = por %p99, %p100
      %p102 = scmp.ne.s32.totalorder %s91, %s94
      %p103 = scmp.eq.s32.totalorder %s18, 1
      %p104 = por %p102, %p103
      %p105 = scmp.ne.s32.totalorder %s94, %s95
      %p106 = scmp.eq.s32.totalorder %s18, 0
      %p107 = por %p105, %p106
      %p108 = scmp.ne.s32.totalorder %s94, %s95
      %p109 = scmp.eq.s32.totalorder %s19, 1
      %p110 = por %p108, %p109
      %p112 = scmp.ne.s32.totalorder %s95, %s111
      %p113 = scmp.eq.s32.totalorder %s19, 0
      %p114 = por %p112, %p113
      %s115 = ssub.s32 %s20, %s32
      %p116 = scmp.eq.s32.totalorder %s115, 0
      %s118 = sadd.s32 %s117, 1
      %s119 = scalar_select %p116, %s117, %s118
      %p122 = pneg %p116
      %p123 = scmp.eq.s32.totalorder %s13, 1
      %p124 = por %p122, %p123
      %p125 = scmp.ne.s32.totalorder %s117, %s120
      %p126 = scmp.eq.s32.totalorder %s13, 0
      %p127 = por %p125, %p126
      %p128 = scmp.ne.s32.totalorder %s117, %s120
      %p129 = scmp.eq.s32.totalorder %s18, 1
      %p130 = por %p128, %p129
      %p131 = scmp.ne.s32.totalorder %s120, %s121
      %p132 = scmp.eq.s32.totalorder %s18, 0
      %p133 = por %p131, %p132
      %p134 = scmp.ne.s32.totalorder %s120, %s121
      %p135 = scmp.eq.s32.totalorder %s19, 1
      %p136 = por %p134, %p135
      %p138 = scmp.ne.s32.totalorder %s121, %s137
      %p139 = scmp.eq.s32.totalorder %s19, 0
      %p140 = por %p138, %p139
      %p141 = scmp.le.s32.totalorder 1, %s13
      %p142 = scmp.lt.s32.totalorder %s13, 3
      %p143 = pnand %p141, %p142
      %p144 = pneg %p143
      // Predicated region
      $region9: #{tpu_custom_call.1} parent=5 // pred_check
        _
      $region10: #{tpu_custom_call.1} parent=5 // pred_check_branch
        %146 = sbr.rel (%p143) target = $region12
      $region11: #{tpu_custom_call.1} parent=5 // pred_region
        %s147 = ssub.s32 %s13, 1
      $region12: #{tpu_custom_call.1} parent=5 // pred_fallthru
        _
      %p148 = scmp.lt.s32.totalorder %s13, 2
      // Predicated region
      $region13: #{tpu_custom_call.1} parent=5 // pred_check
        %p149 = pneg %p148
      $region14: #{tpu_custom_call.1} parent=5 // pred_check_branch
        %151 = sbr.rel (%p149) target = $region16
      $region15: #{tpu_custom_call.1} parent=5 // pred_region
        // Predicated region
        $region17: #{tpu_custom_call.1} parent=15 // pred_check
          %p152 = pneg %p47
        $region18: #{tpu_custom_call.1} parent=15 // pred_check_branch
          %154 = sbr.rel (%p152) target = $region20
        $region19: #{tpu_custom_call.1} parent=15 // pred_region
          %s155 = sadd.s32 %s20, %s21
          %s156 = smul.u32 16, %s155
          %p157 = scmp.lt.s32.totalorder %s156, 31
          %s158 = scalar_select %p157, %s156, 31
          %s159 = smul.addr %s158, 8
          %s160 = scalar_lea.vmem %s0, %s159
          %s161 = sadd.s32 %s20, %s21
          %s162 = smul.u32 16, %s161
        $region20: #{tpu_custom_call.1} parent=15 // pred_fallthru
          _
        // Predicated region
        $region21: #{tpu_custom_call.1} parent=15 // pred_check
          %p163 = pneg %p75
        $region22: #{tpu_custom_call.1} parent=15 // pred_check_branch
          %165 = sbr.rel (%p163) target = $region24
        $region23: #{tpu_custom_call.1} parent=15 // pred_region
          %s166 = sadd.s32 %s20, %s21
          %p167 = scmp.lt.s32.totalorder %s166, 1
          %s168 = scalar_select %p167, %s166, 1
          %s169 = scalar_lea.vmem %s1, %s168
          %s170 = sadd.s32 %s20, %s21
        $region24: #{tpu_custom_call.1} parent=15 // pred_fallthru
          _
      $region16: #{tpu_custom_call.1} parent=5 // pred_fallthru
        _
      %p171 = scmp.le.s32.totalorder 1, %s13
      %p172 = scmp.lt.s32.totalorder %s13, 3
      %p173 = pnand %p171, %p172
      %p174 = pneg %p173
      // Predicated region
      $region25: #{tpu_custom_call.1} parent=5 // pred_check
        _
      $region26: #{tpu_custom_call.1} parent=5 // pred_check_branch
        %176 = sbr.rel (%p173) target = $region28
      $region27: #{tpu_custom_call.1} parent=5 // pred_region
        %s177 = ssub.s32 %s13, 1
        %s178 = sadd.s32 %s22, %s23
        %s179 = smul.u32 16, %s178
        %p180 = scmp.lt.s32.totalorder %s179, 31
        %s181 = scalar_select %p180, %s179, 31
        %s182 = smul.addr %s181, 8
        %s183 = scalar_lea.vmem %s0, %s182
        %p184 = pneg %p53
        %p185 = pneg %p50
        %s186 = sadd.s32 %s22, %s23
        %p187 = scmp.lt.s32.totalorder %s186, 1
        %s188 = scalar_select %p187, %s186, 1
        %s189 = scalar_lea.vmem %s1, %s188
        %p190 = pneg %p81
        %p191 = pneg %p78
        %p192 = pneg %p107
        %p193 = pneg %p104
        %s194 = sand.u32 %s94, 1
        %s195 = scalar_lea.sflag [#allocation3], %s194
        %s196 = sand.u32 %s94, 1
        %s197 = smul.addr %s196, 16
        %s198 = scalar_lea.vmem [#allocation2], %s197
        %p199 = pneg %p133
        %p200 = pneg %p130
        %p201 = scmp.lt.s32.totalorder %s22, 1
        %s202 = scalar_select %p201, %s22, 1
        %s203 = smul.addr %s202, 2
        %s204 = smul.addr %s203, 8
        %s205 = scalar_lea.vmem %s3, %s204
        %s206 = sadd.s32 %s22, %s23
        %s207 = smul.u32 16, %s206
        %p208 = scmp.lt.s32.totalorder %s207, 31
        %s209 = scalar_select %p208, %s207, 31
        %s210 = smul.addr %s209, 8
        %s211 = scalar_lea.vmem %s0, %s210
        %s212 = sadd.s32 %s22, %s23
        %s213 = smul.u32 16, %s212
        %s214 = sadd.s32 %s22, %s23
        %p215 = scmp.lt.s32.totalorder %s214, 1
        %s216 = scalar_select %p215, %s214, 1
        %s217 = scalar_lea.vmem %s1, %s216
        %s218 = sadd.s32 %s22, %s23
        %p219 = scmp.lt.s32.totalorder %s22, 1
        %s220 = scalar_select %p219, %s22, 1
        %s221 = smul.addr %s220, 2
        %s222 = smul.addr %s221, 8
        %s223 = scalar_lea.vmem %s3, %s222
        %p224 = scmp.eq.s32.totalorder %s23, 0
        // Predicated region
        $region29: #{tpu_custom_call.1} parent=27 // pred_check
          %p225 = pneg %p224
        $region30: #{tpu_custom_call.1} parent=27 // pred_check_branch
          %227 = sbr.rel (%p225) target = $region32
        $region31: #{tpu_custom_call.1} parent=27 // pred_region
          %vm228 = vcmask 261120
          %229 = vst.msk [vmem:[%s198] sm:$0xff] %vm228, 0.0
          %230 = vst.msk [vmem:[%s198 + $0x8] sm:$0xff] %vm228, 0.0
          %vm231 = vcmask 7168
          %232 = vst.msk [vmem:[%s223] sm:$0xff] %vm231, 0.0
          %233 = vst.msk [vmem:[%s223 + $0x8] sm:$0xff] %vm231, 0.0
        $region32: #{tpu_custom_call.1} parent=27 // pred_fallthru
          _
        %v234 = vld [vmem:[%s211] sm:$0xff]
        %v235 = vld [vmem:[%s211 + $0x8] sm:$0xff]
        %v236 = vld [vmem:[%s211 + $0x10] sm:$0xff]
        %v237 = vld [vmem:[%s211 + $0x18] sm:$0xff]
        %v238 = vld [vmem:[%s211 + $0x20] sm:$0xff]
        %v239 = vld [vmem:[%s211 + $0x28] sm:$0xff]
        %v240 = vld [vmem:[%s211 + $0x30] sm:$0xff]
        %v241 = vld [vmem:[%s211 + $0x38] sm:$0xff]
        %v242 = vld [vmem:[%s211 + $0x40] sm:$0xff]
        %v243 = vld [vmem:[%s211 + $0x48] sm:$0xff]
        %v244 = vld [vmem:[%s211 + $0x50] sm:$0xff]
        %v245 = vld [vmem:[%s211 + $0x58] sm:$0xff]
        %v246 = vld [vmem:[%s211 + $0x60] sm:$0xff]
        %v247 = vld [vmem:[%s211 + $0x68] sm:$0xff]
        %v248 = vld [vmem:[%s211 + $0x70] sm:$0xff]
        %v249 = vld [vmem:[%s211 + $0x78] sm:$0xff]
        %v250 = vld [vmem:[%s217] sm:$0x1]
        %v251 = vlaneseq
        %v252 = vshrl.u32 %v251, 7
        %v253 = vadd.s32 %v252, 8
        %v254 = vperm.slane %v250, 0
        %vm255 = vcmp.eq.s32.totalorder %v252, %v254
        %vm256 = vcmp.eq.s32.totalorder %v253, %v254
        %v257 = vsel %vm255, 1, 0
        %v258 = vsel %vm256, 1, 0
        %v259 = vcvt.s32.f32 %v257
        %v260 = vcvt.s32.f32 %v258
        %v261 = vld [vmem:[%s198] sm:$0xff]
        %v262 = vld [vmem:[%s198 + $0x8] sm:$0xff]
        %263 = vmatpush.msra.mxu0 %v249
        %264 = vmatpush.msra.mxu0 %v248
        %265 = vmatpush.msra.mxu0 %v247
        %266 = vmatpush.msra.mxu0 %v246
        %267 = vmatpush.msra.mxu0 %v245
        %268 = vmatpush.msra.mxu0 %v244
        %269 = vmatpush.msra.mxu0 %v243
        %270 = vmatpush.msra.mxu0 %v242
        %271 = vmatpush.msra.mxu0 %v241
        %272 = vmatpush.msra.mxu0 %v240
        %273 = vmatpush.msra.mxu0 %v239
        %274 = vmatpush.msra.mxu0 %v238
        %275 = vmatpush.msra.mxu0 %v237
        %276 = vmatpush.msra.mxu0 %v236
        %277 = vmatpush.msra.mxu0 %v235
        %278 = vmatpush.msra.mxu0 %v234
        %279 = vmatmul.f32.gmra.mxu0 %v259
        %v280 = vpop.f32.mrf.mxu0
        %v281 = vadd.f32 0.0, %v280
        %282 = vmatmul.f32.gmra.mxu0 %v260
        %v283 = vpop.f32.mrf.mxu0
        %v284 = vadd.f32 0.0, %v283
        %285 = vdwg.mxu0
        %v286 = vadd.f32 %v261, %v281
        %v287 = vadd.f32 %v262, %v284
        %vm288 = vcmask 261120
        %289 = vst.msk [vmem:[%s198] sm:$0xff] %vm288, %v286
        %290 = vst.msk [vmem:[%s198 + $0x8] sm:$0xff] %vm288, %v287
        %v291 = vld [vmem:[%s223] sm:$0xff]
        %v292 = vld [vmem:[%s223 + $0x8] sm:$0xff]
        %293 = vadd.xlane.f32.xlu0 %v259
        %v294 = vpop.xlane.xlu0 %293
        %295 = vadd.xlane.f32.xlu0 %v260
        %v296 = vpop.xlane.xlu0 %295
        %v297 = vadd.f32 %v291, %v294
        %v298 = vadd.f32 %v292, %v296
        %vm299 = vcmask 7168
        %300 = vst.msk [vmem:[%s223] sm:$0xff] %vm299, %v297
        %301 = vst.msk [vmem:[%s223 + $0x8] sm:$0xff] %vm299, %v298
        %s302 = sand.u32 %s94, 1
        %s303 = scalar_lea.sflag [#allocation3], %s302
        %s304 = sand.u32 %s94, 1
        %s305 = smul.addr %s304, 16
        %s306 = scalar_lea.vmem [#allocation2], %s305
        %p307 = scmp.lt.s32.totalorder %s22, 1
        %s308 = scalar_select %p307, %s22, 1
        %s309 = smul.addr %s308, 2
        %s310 = smul.addr %s309, 8
        %s311 = scalar_lea.vmem %s3, %s310
        // Predicated region
        $region33: #{tpu_custom_call.1} parent=27 // pred_check
          %p312 = pneg %p104
        $region34: #{tpu_custom_call.1} parent=27 // pred_check_branch
          %314 = sbr.rel (%p312) target = $region36
        $region35: #{tpu_custom_call.1} parent=27 // pred_region
          %316 = vsyncadd %s303, 0
          %s317 = smul.addr %s22, 2
          %s318 = smul.addr %s317, 8
          %s319 = scalar_lea.hbm %s2, %s318
          %s320 = sshll.u32 %s306, 4
          %s321 = int_to_ptr.vmem [resolvable:$true] %s320
          %s322 = sshll.u32 %s319, 4
          %s323 = int_to_ptr.hbm [resolvable:$true] %s322
          %328 = dma.vmem_to_hbm [thread:$0]  %s321, 256, %s323, %s303, 128, 128, 8
        $region36: #{tpu_custom_call.1} parent=27 // pred_fallthru
          _
        // Predicated region
        $region37: #{tpu_custom_call.1} parent=27 // pred_check
          %p329 = pneg %p130
        $region38: #{tpu_custom_call.1} parent=27 // pred_check_branch
          %331 = sbr.rel (%p329) target = $region40
        $region39: #{tpu_custom_call.1} parent=27 // pred_region
          _
        $region40: #{tpu_custom_call.1} parent=27 // pred_fallthru
          _
      $region28: #{tpu_custom_call.1} parent=5 // pred_fallthru
        _
      %p332 = scmp.le.s32.totalorder 2, %s13
      // Predicated region
      $region41: #{tpu_custom_call.1} parent=5 // pred_check
        %p333 = pneg %p332
      $region42: #{tpu_custom_call.1} parent=5 // pred_check_branch
        %335 = sbr.rel (%p333) target = $region44
      $region43: #{tpu_custom_call.1} parent=5 // pred_region
        %s336 = ssub.s32 %s13, 2
        // Predicated region
        $region45: #{tpu_custom_call.1} parent=43 // pred_check
          %p337 = pneg %p110
        $region46: #{tpu_custom_call.1} parent=43 // pred_check_branch
          %339 = sbr.rel (%p337) target = $region48
        $region47: #{tpu_custom_call.1} parent=43 // pred_region
          %s340 = sand.u32 %s95, 1
          %s341 = scalar_lea.sflag [#allocation3], %s340
          %s342 = sand.u32 %s95, 1
          %s343 = smul.addr %s342, 16
          %s344 = scalar_lea.vmem [#allocation2], %s343
          %346 = dma.done %s341, 256
        $region48: #{tpu_custom_call.1} parent=43 // pred_fallthru
          _
        // Predicated region
        $region49: #{tpu_custom_call.1} parent=43 // pred_check
          %p347 = pneg %p136
        $region50: #{tpu_custom_call.1} parent=43 // pred_check_branch
          %349 = sbr.rel (%p347) target = $region52
        $region51: #{tpu_custom_call.1} parent=43 // pred_region
          %p350 = scmp.lt.s32.totalorder %s24, 1
          %s351 = scalar_select %p350, %s24, 1
          %s352 = smul.addr %s351, 2
          %s353 = smul.addr %s352, 8
          %s354 = scalar_lea.vmem %s3, %s353
        $region52: #{tpu_custom_call.1} parent=43 // pred_fallthru
          _
      $region44: #{tpu_custom_call.1} parent=5 // pred_fallthru
        _
    $region6: #{tpu_custom_call.1} parent=1 // loop_footer
      %s17 = sadd.s32 1, %s13
    $region7: #{tpu_custom_call.1} parent=1 // loop_footer_branch
      %12 = sbr.rel target = $region3
    $region8: #{tpu_custom_call.1} parent=1 // loop_exit
      _
    %355 = vsyncpa [#allocation3], 1
    %s356 = scalar_lea.sflag [#allocation3], 1
    %357 = vsyncpa %s356, 1

</llo_original>
